<compile_context>
chip_gen: v6e
topology: v6e:2x2x1
jax: 0.10.0
libtpu: 0.0.40
codegen_flags: <defaults>
</compile_context>

<pallas_src>
import functools

import numpy as np
import jax
import jax.numpy as jnp
from jax.experimental import pallas as pl
from jax.experimental.pallas import tpu as pltpu


# -----------------------------------------------------------------------------
# Kernel: one fused MLP-ensemble evaluation per B-tile. Weights VMEM-resident.
# -----------------------------------------------------------------------------
def _make_kernel(num_models: int):
    inv_m = 1.0 / float(num_models)

    def kernel(x_ref, w1_ref, b1_ref, w2_ref, b2_ref, o_ref):
        x = x_ref[...]                                                  # [TB, D]
        # Fused layer 1 of all M members: [TB, D] @ [D, M*H] -> [TB, M*H]
        h = jnp.dot(x, w1_ref[...], preferred_element_type=jnp.float32)
        h = jnp.maximum(h + b1_ref[...], 0.0)
        # Fused layer 2: block-diagonal [M*H, M] -> per-member logits [TB, M]
        logits = jnp.dot(h, w2_ref[...], preferred_element_type=jnp.float32)
        logits = logits + b2_ref[...]
        # sigmoid via a single EUP tanh (no VALU divide), then ensemble mean.
        probs = 0.5 * (jnp.tanh(0.5 * logits) + 1.0)
        o_ref[...] = jnp.sum(probs, axis=-1, keepdims=True) * inv_m     # [TB, 1]

    return kernel


# -----------------------------------------------------------------------------
# Host-side parameter folding: pure numpy, runs ONCE per parameter set.
# -----------------------------------------------------------------------------
def fold_ensemble_params(mean, scale, w1, b1, w2, b2, discrete_action=True):
    """Fold the cumulative StandardScaler chain into W1/b1 and fuse all members.

    mean, scale: [M, D];  w1: [M, D, H];  b1: [M, 1, H];  w2: [M, H, 1];
    b2: [M, 1, 1].  Returns jnp arrays
      W1f [D, M*H], b1f [1, M*H], W2blk [M*H, M], b2f [1, M].
    """
    mean = np.array(mean, dtype=np.float32, copy=True)
    scale = np.array(scale, dtype=np.float32, copy=True)
    w1 = np.asarray(w1, dtype=np.float32)
    b1 = np.asarray(b1, dtype=np.float32)
    w2 = np.asarray(w2, dtype=np.float32)
    b2 = np.asarray(b2, dtype=np.float32)

    M, D = mean.shape
    H = w1.shape[-1]

    if discrete_action:
        # Action column passes through the scaler untouched (slice+concat in
        # the PyTorch forward) -- enforce it here so raw scaler params are safe.
        mean[:, -1] = 0.0
        scale[:, -1] = 1.0

    # Cumulative affine map seen by member i:  x_i = a_i * x0 + c_i
    a = np.ones((D,), dtype=np.float32)
    c = np.zeros((D,), dtype=np.float32)
    a_rows, c_rows = [], []
    for i in range(M):
        a = a / scale[i]
        c = (c - mean[i]) / scale[i]
        a_rows.append(a)
        c_rows.append(c)
    a = np.stack(a_rows)                                        # [M, D]
    c = np.stack(c_rows)                                        # [M, D]

    # Fold scaler into each member's first Linear layer.
    w1_eff = a[:, :, None] * w1                                 # [M, D, H]
    b1_eff = np.einsum('md,mdh->mh', c, w1) + b1[:, 0, :]       # [M, H]

    # Fuse member axis into the output (lane) dimension of layer 1.
    w1f = np.transpose(w1_eff, (1, 0, 2)).reshape(D, M * H)     # [D, M*H]
    b1f = b1_eff.reshape(1, M * H)                              # [1, M*H]

    # Block-diagonal second layer via a mask (no .at[].set loop):
    # rows m*H:(m+1)*H of column m hold member m's weights.
    mask = np.repeat(np.eye(M, dtype=np.float32), H, axis=0)    # [M*H, M]
    w2blk = mask * w2[:, :, 0].reshape(M * H, 1)                # [M*H, M]
    b2f = b2[:, 0, 0].reshape(1, M)                             # [1, M]

    return (jnp.asarray(w1f), jnp.asarray(b1f),
            jnp.asarray(w2blk), jnp.asarray(b2f))


# -----------------------------------------------------------------------------
# Jitted apply path: one dispatch per call, grid over B-tiles.
# -----------------------------------------------------------------------------
_BLOCK_B = 128   # rows per grid step: multiple of 8 (f32 sublanes); fills MXU
                 # sublanes on v5e, and is fine on v6e/v7x (params stay resident).


def _round_up(x, m):
    return (x + m - 1) // m * m


@jax.jit
def _apply_folded(x, w1f, b1f, w2blk, b2f):
    B, D = x.shape
    MH = w1f.shape[1]
    M = w2blk.shape[1]

    tb = min(_BLOCK_B, _round_up(B, 8))
    bp = _round_up(B, tb)
    if bp != B:
        x = jnp.pad(x, ((0, bp - B), (0, 0)))

    out = pl.pallas_call(
        _make_kernel(M),
        out_shape=jax.ShapeDtypeStruct((bp, 1), jnp.float32),
        grid=(bp // tb,),
        in_specs=[
            pl.BlockSpec((tb, D), lambda i: (i, 0)),     # x          (tiled over B)
            pl.BlockSpec((D, MH), lambda i: (0, 0)),     # fused W1'  (resident)
            pl.BlockSpec((1, MH), lambda i: (0, 0)),     # fused b1'  (resident)
            pl.BlockSpec((MH, M), lambda i: (0, 0)),     # block-diag W2 (resident)
            pl.BlockSpec((1, M), lambda i: (0, 0)),      # b2 row     (resident)
        ],
        out_specs=pl.BlockSpec((tb, 1), lambda i: (i, 0)),
        compiler_params=pltpu.CompilerParams(
            dimension_semantics=("parallel",)),          # v7x: split B over 2 TCs
    )(x, w1f, b1f, w2blk, b2f)

    return out[:B, 0]                                    # [B] per-row ensemble mean


class EnsembleMLPDriftDetectorTPU:
    """Folds parameters once at construction; __call__ only runs the kernel."""

    def __init__(self, mean, scale, w1, b1, w2, b2, discrete_action=True):
        self._folded = fold_ensemble_params(
            mean, scale, w1, b1, w2, b2, discrete_action=discrete_action)

    def __call__(self, x):
        # x: [B, D]. Returns [B] drift probabilities (B=1 matches `.item()`).
        return _apply_folded(x, *self._folded)


# -----------------------------------------------------------------------------
# Pure-JAX reference mirroring the sequential PyTorch loop exactly.
# -----------------------------------------------------------------------------
def _reference(x, mean, scale, w1, b1, w2, b2, discrete_action=True):
    M = w1.shape[0]
    acc = 0.0
    for i in range(M):
        if discrete_action:
            t = (x[:, :-1] - mean[i, :-1]) / scale[i, :-1]
            x = jnp.concatenate([t, x[:, -1:]], axis=-1)
        else:
            x = (x - mean[i]) / scale[i]
        h = jnp.maximum(x @ w1[i] + b1[i], 0.0)
        acc = acc + jax.nn.sigmoid(h @ w2[i] + b2[i])
    return (acc / M)[:, 0]


if __name__ == "__main__":
    D = 8          # 7 transition features + 1 discrete action column
    H = 32         # MLP hidden width
    M = 4          # ensemble size  (M*H = 128 -> one full-lane-width MXU pass)
    discrete_action = True

    key = jax.random.PRNGKey(0)
    km, ks, kw1, kb1, kw2, kb2, kx1, kx2 = jax.random.split(key, 8)

    mean = jax.random.normal(km, (M, D), dtype=jnp.float32) * 0.1
    scale = jnp.abs(jax.random.normal(ks, (M, D), dtype=jnp.float32)) + 0.5
    w1 = jax.random.normal(kw1, (M, D, H), dtype=jnp.float32) * 0.3
    b1 = jax.random.normal(kb1, (M, 1, H), dtype=jnp.float32) * 0.1
    w2 = jax.random.normal(kw2, (M, H, 1), dtype=jnp.float32) * 0.3
    b2 = jax.random.normal(kb2, (M, 1, 1), dtype=jnp.float32) * 0.1

    # Parameters folded exactly once here (cached inside the detector).
    detector = EnsembleMLPDriftDetectorTPU(
        mean, scale, w1, b1, w2, b2, discrete_action=discrete_action)

    # (1) Strict single-sample path, matching the PyTorch `.item()` contract.
    x1 = jax.random.normal(kx1, (1, D), dtype=jnp.float32)
    out1 = jax.block_until_ready(detector(x1))
    ref1 = _reference(x1, mean, scale, w1, b1, w2, b2, discrete_action)
    assert out1.shape == (1,)
    assert jnp.allclose(out1, ref1, atol=1e-5, rtol=1e-5), (out1, ref1)

    # (2) Batched path (rows independent): exercises padding + multi-step grid.
    x2 = jax.random.normal(kx2, (300, D), dtype=jnp.float32)
    out2 = jax.block_until_ready(detector(x2))
    ref2 = _reference(x2, mean, scale, w1, b1, w2, b2, discrete_action)
    assert out2.shape == (300,)
    assert jnp.allclose(out2, ref2, atol=1e-5, rtol=1e-5)

    print("KERNEL_OK")
</pallas_src>

<mosaic_0001>
module attributes {stable_mosaic.version = 11 : i64} {
  func.func @kernel(%arg0: i32, %arg1: memref<8x8xf32, #tpu.memory_space<vmem>>, %arg2: memref<8x128xf32, #tpu.memory_space<vmem>>, %arg3: memref<1x128xf32, #tpu.memory_space<vmem>>, %arg4: memref<128x4xf32, #tpu.memory_space<vmem>>, %arg5: memref<1x4xf32, #tpu.memory_space<vmem>>, %arg6: memref<8x1xf32, #tpu.memory_space<vmem>>) attributes {dimension_semantics = [#tpu.dimension_semantics<parallel>], iteration_bounds = array<i64: 1>, scalar_prefetch = 0 : i64, scratch_operands = 0 : i64, tpu.core_type = #tpu.core_type<tc>, window_params = [{transform_indices = @transform_0, window_bounds = array<i64: 8, 8>}, {pipeline_mode = #tpu.pipeline_mode<synchronous>, transform_indices = @transform_1, window_bounds = array<i64: 8, 128>}, {pipeline_mode = #tpu.pipeline_mode<synchronous>, transform_indices = @transform_2, window_bounds = array<i64: 1, 128>}, {pipeline_mode = #tpu.pipeline_mode<synchronous>, transform_indices = @transform_3, window_bounds = array<i64: 128, 4>}, {pipeline_mode = #tpu.pipeline_mode<synchronous>, transform_indices = @transform_4, window_bounds = array<i64: 1, 4>}, {transform_indices = @transform_5, window_bounds = array<i64: 8, 1>}]} {
    %c0 = arith.constant 0 : index
    %c0_0 = arith.constant 0 : index
    %0 = vector.load %arg1[%c0, %c0_0] : memref<8x8xf32, #tpu.memory_space<vmem>>, vector<8x8xf32>
    %c0_1 = arith.constant 0 : index
    %c0_2 = arith.constant 0 : index
    %1 = vector.load %arg2[%c0_1, %c0_2] : memref<8x128xf32, #tpu.memory_space<vmem>>, vector<8x128xf32>
    %cst = arith.constant dense<0.000000e+00> : vector<8x128xf32>
    %2 = tpu.matmul %0, %1, %cst {dimension_numbers = #tpu.dot_dimension_numbers<[1], [0], [0], [1], [0, 0, 1, 1], [], []>} : vector<8x8xf32>, vector<8x128xf32>, vector<8x128xf32> -> vector<8x128xf32>
    %c0_3 = arith.constant 0 : index
    %c0_4 = arith.constant 0 : index
    %3 = vector.load %arg3[%c0_3, %c0_4] : memref<1x128xf32, #tpu.memory_space<vmem>>, vector<1x128xf32>
    %4 = vector.broadcast %3 : vector<1x128xf32> to vector<8x128xf32>
    %5 = arith.addf %2, %4 : vector<8x128xf32>
    %cst_5 = arith.constant 0.000000e+00 : f32
    %6 = vector.broadcast %cst_5 : f32 to vector<8x128xf32>
    %7 = arith.maximumf %5, %6 : vector<8x128xf32>
    %c0_6 = arith.constant 0 : index
    %c0_7 = arith.constant 0 : index
    %8 = vector.load %arg4[%c0_6, %c0_7] : memref<128x4xf32, #tpu.memory_space<vmem>>, vector<128x4xf32>
    %cst_8 = arith.constant dense<0.000000e+00> : vector<8x4xf32>
    %9 = tpu.matmul %7, %8, %cst_8 {dimension_numbers = #tpu.dot_dimension_numbers<[1], [0], [0], [1], [0, 0, 1, 1], [], []>} : vector<8x128xf32>, vector<128x4xf32>, vector<8x4xf32> -> vector<8x4xf32>
    %c0_9 = arith.constant 0 : index
    %c0_10 = arith.constant 0 : index
    %10 = vector.load %arg5[%c0_9, %c0_10] : memref<1x4xf32, #tpu.memory_space<vmem>>, vector<1x4xf32>
    %11 = vector.broadcast %10 : vector<1x4xf32> to vector<8x4xf32>
    %12 = arith.addf %9, %11 : vector<8x4xf32>
    %cst_11 = arith.constant 5.000000e-01 : f32
    %13 = vector.broadcast %cst_11 : f32 to vector<8x4xf32>
    %14 = arith.mulf %13, %12 : vector<8x4xf32>
    %15 = math.tanh %14 : vector<8x4xf32>
    %cst_12 = arith.constant 1.000000e+00 : f32
    %16 = vector.broadcast %cst_12 : f32 to vector<8x4xf32>
    %17 = arith.addf %15, %16 : vector<8x4xf32>
    %cst_13 = arith.constant 5.000000e-01 : f32
    %18 = vector.broadcast %cst_13 : f32 to vector<8x4xf32>
    %19 = arith.mulf %18, %17 : vector<8x4xf32>
    %cst_14 = arith.constant dense<0.000000e+00> : vector<8xf32>
    %20 = vector.multi_reduction <add>, %19, %cst_14 [1] : vector<8x4xf32> to vector<8xf32>
    %21 = vector.shape_cast %20 : vector<8xf32> to vector<8x1xf32>
    %cst_15 = arith.constant 2.500000e-01 : f32
    %22 = vector.broadcast %cst_15 : f32 to vector<8x1xf32>
    %23 = arith.mulf %21, %22 : vector<8x1xf32>
    %c0_16 = arith.constant 0 : index
    %c0_17 = arith.constant 0 : index
    %24 = vector.load %arg6[%c0_16, %c0_17] : memref<8x1xf32, #tpu.memory_space<vmem>>, vector<8x1xf32>
    tpu.vector_store %arg6[%c0_16, %c0_17], %23 {strides = array<i32>} : memref<8x1xf32, #tpu.memory_space<vmem>>, vector<8x1xf32>,
    return
  }
  func.func @transform_0(%arg0: i32) -> (i32, i32) {
    %c0_i32 = arith.constant 0 : i32
    %c0_i32_0 = arith.constant 0 : i32
    return %arg0, %c0_i32 : i32, i32
  }
  func.func @transform_1(%arg0: i32) -> (i32, i32) {
    %c0_i32 = arith.constant 0 : i32
    %c0_i32_0 = arith.constant 0 : i32
    %c0_i32_1 = arith.constant 0 : i32
    return %c0_i32, %c0_i32_0 : i32, i32
  }
  func.func @transform_2(%arg0: i32) -> (i32, i32) {
    %c0_i32 = arith.constant 0 : i32
    %c0_i32_0 = arith.constant 0 : i32
    %c0_i32_1 = arith.constant 0 : i32
    return %c0_i32, %c0_i32_0 : i32, i32
  }
  func.func @transform_3(%arg0: i32) -> (i32, i32) {
    %c0_i32 = arith.constant 0 : i32
    %c0_i32_0 = arith.constant 0 : i32
    %c0_i32_1 = arith.constant 0 : i32
    return %c0_i32, %c0_i32_0 : i32, i32
  }
  func.func @transform_4(%arg0: i32) -> (i32, i32) {
    %c0_i32 = arith.constant 0 : i32
    %c0_i32_0 = arith.constant 0 : i32
    %c0_i32_1 = arith.constant 0 : i32
    return %c0_i32, %c0_i32_0 : i32, i32
  }
  func.func @transform_5(%arg0: i32) -> (i32, i32) {
    %c0_i32 = arith.constant 0 : i32
    %c0_i32_0 = arith.constant 0 : i32
    return %arg0, %c0_i32 : i32, i32
  }
}

</mosaic_0001>

<llo_original>
// kernel: _apply_folded.1
$region0: #{_apply_folded.1}
  #allocation0 [shape = 'u32[]', space=smem, size = 0x4, offset = 0x4, fixed_abs, tag = 'smem constant byte address 0x4 - core index']
  #allocation1 [shape = 'u32[144,128]{1,0:T(1,128)}', space=vmem, size = 0x12000, scoped, tag = 'internal scratch']
  %s0 = inlined_call_operand.vmem [shape: f32[8,8], index: 0, kind: input, shape index: {}]
  %s1 = inlined_call_operand.vmem [shape: f32[8,128], index: 1, kind: input, shape index: {}]
  %s2 = inlined_call_operand.vmem [shape: f32[1,128], index: 2, kind: input, shape index: {}]
  %s3 = inlined_call_operand.vmem [shape: f32[128,4], index: 3, kind: input, shape index: {}]
  %s4 = inlined_call_operand.vmem [shape: f32[1,4], index: 4, kind: input, shape index: {}]
  %s5 = inlined_call_operand.vmem [shape: f32[8,1], index: 5, kind: output, shape index: {}]
  %s6 = sld [smem:[#allocation0]]
  $region30: #{_apply_folded.1} parent=0
    _
  %s8 = ssub.s32 1, %s6
  %s9 = scalar_select 0, %s8, %s6
  // Predicated region
  $region2: #{_apply_folded.1} parent=0 // pred_check
    _
  $region3: #{_apply_folded.1} parent=0 // pred_check_branch
    %11 = sbr.rel (0) target = $region5
  $region4: #{_apply_folded.1} parent=0 // pred_region
    _
  $region5: #{_apply_folded.1} parent=0 // pred_fallthru
    _
  // Predicated region
  $region6: #{_apply_folded.1} parent=0 // pred_check
    _
  $region7: #{_apply_folded.1} parent=0 // pred_check_branch
    %13 = sbr.rel (0) target = $region9
  $region8: #{_apply_folded.1} parent=0 // pred_region
    _
  $region9: #{_apply_folded.1} parent=0 // pred_fallthru
    _
  // Predicated region
  $region10: #{_apply_folded.1} parent=0 // pred_check
    _
  $region11: #{_apply_folded.1} parent=0 // pred_check_branch
    %15 = sbr.rel (0) target = $region13
  $region12: #{_apply_folded.1} parent=0 // pred_region
    _
  $region13: #{_apply_folded.1} parent=0 // pred_fallthru
    _
  // Predicated region
  $region14: #{_apply_folded.1} parent=0 // pred_check
    _
  $region15: #{_apply_folded.1} parent=0 // pred_check_branch
    %17 = sbr.rel (0) target = $region17
  $region16: #{_apply_folded.1} parent=0 // pred_region
    _
  $region17: #{_apply_folded.1} parent=0 // pred_fallthru
    _
  // Predicated region
  $region18: #{_apply_folded.1} parent=0 // pred_check
    _
  $region19: #{_apply_folded.1} parent=0 // pred_check_branch
    %19 = sbr.rel (0) target = $region21
  $region20: #{_apply_folded.1} parent=0 // pred_region
    _
  $region21: #{_apply_folded.1} parent=0 // pred_fallthru
    _
  %v20 = vld [vmem:[%s0] sm:$0xff]
  %v21 = vld [vmem:[%s1] sm:$0xff]
  %v22 = vld [vmem:[%s2] sm:$0x1]
  %v24 = vlaneseq
  %v25 = vshrl.u32 %v24, 7
  %v26 = vsub.s32 0, %v25
  %v27 = vrot.slane %v22, %v26
  %vm29 = vcmask 64512
  %v31 = vsel %vm29, %v20, 0
  %33 = vmatprep.subr.mxu0 0.0
  %34 = vmatpush1.msra.mxu0 0.0
  %35 = vmatprep.subr.mxu0 0.0
  %36 = vmatpush1.msra.mxu0 0.0
  %37 = vmatprep.subr.mxu0 0.0
  %38 = vmatpush1.msra.mxu0 0.0
  %39 = vmatprep.subr.mxu0 0.0
  %40 = vmatpush1.msra.mxu0 0.0
  %41 = vmatprep.subr.mxu0 0.0
  %42 = vmatpush1.msra.mxu0 0.0
  %43 = vmatprep.subr.mxu0 0.0
  %44 = vmatpush1.msra.mxu0 0.0
  %45 = vmatprep.subr.mxu0 0.0
  %46 = vmatpush1.msra.mxu0 0.0
  %47 = vmatprep.subr.mxu0 0.0
  %48 = vmatpush1.msra.mxu0 0.0
  %49 = vmatprep.subr.mxu0 0.0
  %50 = vmatpush1.msra.mxu0 0.0
  %51 = vmatprep.subr.mxu0 0.0
  %52 = vmatpush1.msra.mxu0 0.0
  %53 = vmatprep.subr.mxu0 0.0
  %54 = vmatpush1.msra.mxu0 0.0
  %55 = vmatprep.subr.mxu0 0.0
  %56 = vmatpush1.msra.mxu0 0.0
  %57 = vmatprep.subr.mxu0 0.0
  %58 = vmatpush1.msra.mxu0 0.0
  %59 = vmatprep.subr.mxu0 0.0
  %60 = vmatpush1.msra.mxu0 0.0
  %61 = vmatprep.subr.mxu0 0.0
  %62 = vmatpush1.msra.mxu0 0.0
  %63 = vmatprep.subr.mxu0 0.0
  %64 = vmatpush1.msra.mxu0 %v21
  %65 = vmatprep.subr.mxu0 0.0
  %66 = vmatpush2.msra.mxu0 0.0
  %67 = vmatprep.subr.mxu0 0.0
  %68 = vmatpush2.msra.mxu0 0.0
  %69 = vmatprep.subr.mxu0 0.0
  %70 = vmatpush2.msra.mxu0 0.0
  %71 = vmatprep.subr.mxu0 0.0
  %72 = vmatpush2.msra.mxu0 0.0
  %73 = vmatprep.subr.mxu0 0.0
  %74 = vmatpush2.msra.mxu0 0.0
  %75 = vmatprep.subr.mxu0 0.0
  %76 = vmatpush2.msra.mxu0 0.0
  %77 = vmatprep.subr.mxu0 0.0
  %78 = vmatpush2.msra.mxu0 0.0
  %79 = vmatprep.subr.mxu0 0.0
  %80 = vmatpush2.msra.mxu0 0.0
  %81 = vmatprep.subr.mxu0 0.0
  %82 = vmatpush2.msra.mxu0 0.0
  %83 = vmatprep.subr.mxu0 0.0
  %84 = vmatpush2.msra.mxu0 0.0
  %85 = vmatprep.subr.mxu0 0.0
  %86 = vmatpush2.msra.mxu0 0.0
  %87 = vmatprep.subr.mxu0 0.0
  %88 = vmatpush2.msra.mxu0 0.0
  %89 = vmatprep.subr.mxu0 0.0
  %90 = vmatpush2.msra.mxu0 0.0
  %91 = vmatprep.subr.mxu0 0.0
  %92 = vmatpush2.msra.mxu0 0.0
  %93 = vmatprep.subr.mxu0 0.0
  %94 = vmatpush2.msra.mxu0 0.0
  %95 = vmatprep.subr.mxu0 0.0
  %96 = vmatpush2.msra.mxu0 0.0
  %97 = vmatprep.mubr.f32.mxu0 0.0
  %98 = vmatmul.mubr.f32.gmra.mxu0 %v31
  %v99 = vpop.f32.mrf.mxu0
  %v100 = vadd.f32 %v27, %v99
  %v101 = vpop.f32.mrf.mxu0
  %102 = vdwg.mxu0
  %v103 = vmax.f32 %v100, 0.0
  %v104 = vld [vmem:[%s3] sm:$0xff]
  %v105 = vld [vmem:[%s3 + $0x8] sm:$0xff]
  %v106 = vld [vmem:[%s3 + $0x10] sm:$0xff]
  %v107 = vld [vmem:[%s3 + $0x18] sm:$0xff]
  %v108 = vld [vmem:[%s3 + $0x20] sm:$0xff]
  %v109 = vld [vmem:[%s3 + $0x28] sm:$0xff]
  %v110 = vld [vmem:[%s3 + $0x30] sm:$0xff]
  %v111 = vld [vmem:[%s3 + $0x38] sm:$0xff]
  %v112 = vld [vmem:[%s3 + $0x40] sm:$0xff]
  %v113 = vld [vmem:[%s3 + $0x48] sm:$0xff]
  %v114 = vld [vmem:[%s3 + $0x50] sm:$0xff]
  %v115 = vld [vmem:[%s3 + $0x58] sm:$0xff]
  %v116 = vld [vmem:[%s3 + $0x60] sm:$0xff]
  %v117 = vld [vmem:[%s3 + $0x68] sm:$0xff]
  %v118 = vld [vmem:[%s3 + $0x70] sm:$0xff]
  %v119 = vld [vmem:[%s3 + $0x78] sm:$0xff]
  %v120 = vld [vmem:[%s4] sm:$0x1]
  %v122 = vlaneseq
  %v123 = vshrl.u32 %v122, 7
  %v124 = vsub.s32 0, %v123
  %v125 = vrot.slane %v120, %v124
  %127 = vmatprep.subr.mxu0 0.0
  %128 = vmatpush1.msra.mxu0 %v119
  %129 = vmatprep.subr.mxu0 0.0
  %130 = vmatpush1.msra.mxu0 %v118
  %131 = vmatprep.subr.mxu0 0.0
  %132 = vmatpush1.msra.mxu0 %v117
  %133 = vmatprep.subr.mxu0 0.0
  %134 = vmatpush1.msra.mxu0 %v116
  %135 = vmatprep.subr.mxu0 0.0
  %136 = vmatpush1.msra.mxu0 %v115
  %137 = vmatprep.subr.mxu0 0.0
  %138 = vmatpush1.msra.mxu0 %v114
  %139 = vmatprep.subr.mxu0 0.0
  %140 = vmatpush1.msra.mxu0 %v113
  %141 = vmatprep.subr.mxu0 0.0
  %142 = vmatpush1.msra.mxu0 %v112
  %143 = vmatprep.subr.mxu0 0.0
  %144 = vmatpush1.msra.mxu0 %v111
  %145 = vmatprep.subr.mxu0 0.0
  %146 = vmatpush1.msra.mxu0 %v110
  %147 = vmatprep.subr.mxu0 0.0
  %148 = vmatpush1.msra.mxu0 %v109
  %149 = vmatprep.subr.mxu0 0.0
  %150 = vmatpush1.msra.mxu0 %v108
  %151 = vmatprep.subr.mxu0 0.0
  %152 = vmatpush1.msra.mxu0 %v107
  %153 = vmatprep.subr.mxu0 0.0
  %154 = vmatpush1.msra.mxu0 %v106
  %155 = vmatprep.subr.mxu0 0.0
  %156 = vmatpush1.msra.mxu0 %v105
  %157 = vmatprep.subr.mxu0 0.0
  %158 = vmatpush1.msra.mxu0 %v104
  %159 = vmatprep.subr.mxu0 0.0
  %160 = vmatpush2.msra.mxu0 0.0
  %161 = vmatprep.subr.mxu0 0.0
  %162 = vmatpush2.msra.mxu0 0.0
  %163 = vmatprep.subr.mxu0 0.0
  %164 = vmatpush2.msra.mxu0 0.0
  %165 = vmatprep.subr.mxu0 0.0
  %166 = vmatpush2.msra.mxu0 0.0
  %167 = vmatprep.subr.mxu0 0.0
  %168 = vmatpush2.msra.mxu0 0.0
  %169 = vmatprep.subr.mxu0 0.0
  %170 = vmatpush2.msra.mxu0 0.0
  %171 = vmatprep.subr.mxu0 0.0
  %172 = vmatpush2.msra.mxu0 0.0
  %173 = vmatprep.subr.mxu0 0.0
  %174 = vmatpush2.msra.mxu0 0.0
  %175 = vmatprep.subr.mxu0 0.0
  %176 = vmatpush2.msra.mxu0 0.0
  %177 = vmatprep.subr.mxu0 0.0
  %178 = vmatpush2.msra.mxu0 0.0
  %179 = vmatprep.subr.mxu0 0.0
  %180 = vmatpush2.msra.mxu0 0.0
  %181 = vmatprep.subr.mxu0 0.0
  %182 = vmatpush2.msra.mxu0 0.0
  %183 = vmatprep.subr.mxu0 0.0
  %184 = vmatpush2.msra.mxu0 0.0
  %185 = vmatprep.subr.mxu0 0.0
  %186 = vmatpush2.msra.mxu0 0.0
  %187 = vmatprep.subr.mxu0 0.0
  %188 = vmatpush2.msra.mxu0 0.0
  %189 = vmatprep.subr.mxu0 0.0
  %190 = vmatpush2.msra.mxu0 0.0
  %191 = vmatprep.mubr.f32.mxu0 0.0
  %192 = vmatmul.mubr.f32.gmra.mxu0 %v103
  %v193 = vpop.f32.mrf.mxu0
  %v194 = vadd.f32 %v125, %v193
  %v195 = vpop.f32.mrf.mxu0
  %196 = vdwg.mxu0
  %v197 = vmul.f32 %v194, 0.5
  %v198 = vtanh.pop %v197
  %v199 = vadd.f32 %v198, 1.0
  %v200 = vmul.f32 %v199, 0.5
  %vm201 = vcmask 31744
  %v202 = vsel %vm201, %v200, 0.0
  %203 = vadd.xlane.f32.xlu0 %v202
  %v204 = vpop.xlane.xlu0 %203
  %v205 = vmul.f32 %v204, 0.25
  %vm206 = vcmask 7168
  %207 = vst.msk [vmem:[%s5] sm:$0xff] %vm206, %v205
  // Predicated region
  $region22: #{_apply_folded.1} parent=0 // pred_check
    _
  $region23: #{_apply_folded.1} parent=0 // pred_check_branch
    %209 = sbr.rel (0) target = $region25
  $region24: #{_apply_folded.1} parent=0 // pred_region
    _
  $region25: #{_apply_folded.1} parent=0 // pred_fallthru
    _
  // Predicated region
  $region26: #{_apply_folded.1} parent=0 // pred_check
    _
  $region27: #{_apply_folded.1} parent=0 // pred_check_branch
    %211 = sbr.rel (0) target = $region29
  $region28: #{_apply_folded.1} parent=0 // pred_region
    _
  $region29: #{_apply_folded.1} parent=0 // pred_fallthru
    _

</llo_original>
